<compile_context>
chip_gen: v5e
topology: v5e:2x2
jax: 0.10.0
libtpu: 0.0.40
codegen_flags: <defaults>
</compile_context>

<pallas_src>
import functools

import numpy as np
import jax
import jax.numpy as jnp
from jax import lax
from jax.experimental import pallas as pl
from jax.experimental.pallas import tpu as pltpu


W_EDGE, W_LAP, W_FLAT = 1500.0, 10.0, 1.0     # MeshRegularizationLoss weights
_LANES = 128
_OUT_LANES = 128                              # packed scalar-output width


def _cdiv(a, b):
    return -(-a // b)


@functools.lru_cache(maxsize=1)
def _vmem_limit_bytes():
    """Generation-dependent scoped-VMEM limit (~48 MiB on v7x, ~96 MiB on v5e/v6e)."""
    cap = 128 * 1024 * 1024
    try:
        cap = int(getattr(pltpu.get_tpu_info(), "vmem_capacity_bytes", cap))
    except Exception:       # query unavailable -> conservative default
        pass
    return int(min(100 * 1024 * 1024, (cap * 3) // 4))


# --------------------------------------------------------------------------
# Kernel 1: pose-weighted image L1 (batch-parallel, chunk-arbitrary accumulator)
# --------------------------------------------------------------------------
def _img_l1_kernel(pose_ref, i_ref, ihat_ref, o_ref):
    c = pl.program_id(1)

    @pl.when(c == 0)
    def _():
        o_ref[...] = jnp.zeros_like(o_ref)

    # (NH, R, 128) - (1, R, 128): sublane- and lane-full vregs
    d = jnp.abs(ihat_ref[0] - i_ref[0])
    per = jnp.sum(d, axis=2)                          # (NH, R)   lane reduce
    per = jnp.sum(per, axis=1, keepdims=True)         # (NH, 1)   sublane reduce
    o_ref[...] += jnp.sum(per * pose_ref[0])          # pose_ref[0]: (NH, 1)


def weighted_l1_image_sums(I, I_hat5, pose_probs, chunk_rows=None):
    """Per-batch  sum_nh p[b,nh] * sum_{c,h,w} |I - I_hat|  returned as (B,1,1)."""
    B, NC, H, W = I.shape
    NH = I_hat5.shape[1]
    P = NC * H * W
    rows_total = _cdiv(P, _LANES)

    if chunk_rows is None:
        # Cap the per-step I_hat block at ~8 MiB (v7x-friendly): NH * R * 128 * 4 B.
        chunk_rows = max(8, (8 * 1024 * 1024) // (NH * _LANES * 4))
    chunk_rows = min(int(chunk_rows), rows_total)
    if chunk_rows < rows_total:
        chunk_rows = max(8, (chunk_rows // 8) * 8)    # sublane-aligned blocks
        n_chunks = _cdiv(rows_total, chunk_rows)
    else:
        chunk_rows, n_chunks = rows_total, 1
    rows_pad = n_chunks * chunk_rows
    P_pad = rows_pad * _LANES

    I_flat = I.reshape(B, 1, P)
    Ih_flat = I_hat5.reshape(B, NH, P)
    if P_pad > P:                                     # zero padding: |0 - 0| adds nothing
        pad = ((0, 0), (0, 0), (0, P_pad - P))
        I_flat = jnp.pad(I_flat, pad)
        Ih_flat = jnp.pad(Ih_flat, pad)
    I4 = I_flat.reshape(B, 1, rows_pad, _LANES)
    Ih4 = Ih_flat.reshape(B, NH, rows_pad, _LANES)
    pose3 = pose_probs.reshape(B, NH, 1).astype(jnp.float32)

    return pl.pallas_call(
        _img_l1_kernel,
        out_shape=jax.ShapeDtypeStruct((B, 1, 1), jnp.float32),
        grid=(B, n_chunks),
        in_specs=[
            pl.BlockSpec((1, NH, 1), lambda b, c: (b, 0, 0)),
            pl.BlockSpec((1, 1, chunk_rows, _LANES), lambda b, c: (b, 0, c, 0)),
            pl.BlockSpec((1, NH, chunk_rows, _LANES), lambda b, c: (b, 0, c, 0)),
        ],
        out_specs=pl.BlockSpec((1, 1, 1), lambda b, c: (b, 0, 0)),
        compiler_params=pltpu.CompilerParams(
            dimension_semantics=("parallel", "arbitrary"),
            vmem_limit_bytes=_vmem_limit_bytes()),
        cost_estimate=pl.CostEstimate(
            flops=2 * B * NH * P_pad, transcendentals=0,
            bytes_accessed=4 * B * (NH + 1) * P_pad),
    )(pose3, I4, Ih4)


# --------------------------------------------------------------------------
# Kernel 2: single fused reduction kernel for every small loss term
# --------------------------------------------------------------------------
def _make_fused_kernel(b3):
    def kernel(l_ref, vt_ref, wsel_ref, ev1_ref, ev2_ref, dl_ref, cnt_ref, fs_ref,
               xi_ref, xib_ref, xibsg_ref, t_ref, tbsg_ref, v_ref, wv_ref, wx_ref,
               out_ref):
        # ---- Laplacian regularizers: ONE stacked MXU matmul for both mesh sets.
        vt = vt_ref[...]                                         # (nV, B*3 + B*nI*3)
        y = jnp.dot(l_ref[...], vt, preferred_element_type=jnp.float32)
        ysq = y * y
        ncols = ysq.shape[1]
        col = lax.broadcasted_iota(jnp.int32, (1, ncols), 1)
        m1 = (col < b3).astype(jnp.float32)                      # 1 on M_pe columns
        lap1 = jnp.sum(ysq * m1)
        lap2 = jnp.sum(ysq) - lap1

        # ---- edge regularizers: gather-diff done in the wrapper, VPU square-sum.
        e1 = ev1_ref[...]
        e2 = ev2_ref[...]
        edge1 = jnp.sum(e1 * e1)
        edge2 = jnp.sum(e2 * e2)

        # ---- delta per-face variance (ddof=1) via sum(x^2) - (sum_verts x)^2 / 3.
        d = dl_ref[...]
        fs = fs_ref[...]
        dvar = 0.5 * (jnp.sum(d * d * cnt_ref[...]) - jnp.sum(fs * fs) * (1.0 / 3.0))

        # ---- hypothesis consistency (best hypothesis broadcast in-kernel).
        dxi = xi_ref[...] - xibsg_ref[...]                       # (B,NH,dxi) - (B,1,dxi)
        xims = jnp.sum(dxi * dxi)
        dt = t_ref[...] - tbsg_ref[...]                          # (B,NH,3)  - (B,1,3)
        tms = jnp.sum(dt * dt)

        # ---- latent L2 regularizer.
        vv = v_ref[...]
        vsq = jnp.sum(vv * vv)

        # TODO(synk): external GAN critics replaced by deterministic linear
        # stand-ins; the mesh part reuses the matmul operand columns (wsel is
        # the per-column critic weight, zero on the M_pe_ints columns).
        sadv = jnp.sum(v_ref[...] * wv_ref[...]) + jnp.sum(vt * wsel_ref[...])
        xadv = jnp.sum(xib_ref[...] * wx_ref[...])               # best hyp, no stop-grad

        # ---- pack all ten scalars into one lane-dense (1,128) output block.
        lane = lax.broadcasted_iota(jnp.int32, (1, _OUT_LANES), 1)
        out = jnp.zeros((1, _OUT_LANES), jnp.float32)
        for k, s in enumerate((lap1, lap2, edge1, edge2, dvar,
                               xims, tms, vsq, sadv, xadv)):
            out = jnp.where(lane == k, s, out)
        out_ref[...] = out
    return kernel


def fused_scalar_losses(L, Vt_all, wsel, ev1, ev2, d_flat, cnt, fs_flat,
                        xi_T, xi_best, xi_best_sg, t_sq, t_best_sg, v, w_v, w_x, *, B):
    # TODO(synk): for non-toy meshes (nV >~ 2k) the Laplacian rows should be
    # tiled with a grid axis + accumulator instead of whole-array VMEM residency.
    n_in = 16
    out = pl.pallas_call(
        _make_fused_kernel(B * 3),
        out_shape=jax.ShapeDtypeStruct((1, _OUT_LANES), jnp.float32),
        in_specs=[pl.BlockSpec(memory_space=pltpu.MemorySpace.VMEM)] * n_in,
        out_specs=pl.BlockSpec(memory_space=pltpu.MemorySpace.VMEM),
        compiler_params=pltpu.CompilerParams(vmem_limit_bytes=_vmem_limit_bytes()),
    )(L, Vt_all, wsel, ev1, ev2, d_flat, cnt, fs_flat,
      xi_T, xi_best, xi_best_sg, t_sq, t_best_sg, v, w_v, w_x)
    return out[0]


# --------------------------------------------------------------------------
# Forward pass
# --------------------------------------------------------------------------
def cycle2_loss_forward(opts, E_np, F_np, params,
                        I, I_hat, M_pe, xi_T, pose_probs, v, delta,
                        M_pe_ints, t_inferred, img_chunk_rows=None):
    B, dim_v = v.shape
    BNH, NC, H, W = I_hat.shape
    NH = BNH // B
    _, nV, _ = M_pe.shape
    nI = delta.shape[1]
    nE = int(E_np.shape[0])
    nF = int(F_np.shape[0])
    dxi = xi_T.shape[-1]

    I_hat5 = I_hat.reshape(B, NH, NC, H, W)

    # --- image reconstruction (pose-weighted L1): kernel 1 ----------------------
    img_sums = weighted_l1_image_sums(I, I_hat5, pose_probs, chunk_rows=img_chunk_rows)
    # sum_c mean_{h,w} |.| == sum_{c,h,w} |.| / (H*W) (channels are summed)
    img_loss = opts["w_img_recon_l1"] * jnp.mean(img_sums) / (H * W)

    # TODO(synk): pytorch_msssim MS-SSIM and VGG/img-critic perceptual loss have no clean
    # Pallas equivalent; disabled through the module's own weight gating (w < threshold).
    ms_ssim_loss = 0.0
    p_img_loss = 0.0
    # TODO(synk): RotationNegEntropyLoss definition unavailable in reference; contributes 0.
    rot_div_loss = 0.0

    # --- best-hypothesis selection (tiny gathers; glue) --------------------------
    inds = jnp.argmax(pose_probs, axis=1)                                 # (B,)
    xi_best = jnp.take_along_axis(xi_T, inds[:, None, None], axis=1)      # (B,1,dxi), no SG (critic)
    xi_best_sg = jax.lax.stop_gradient(xi_best)                           # consistency target
    t_sq = t_inferred[..., 0]                                             # (B,NH,3)
    t_best_sg = jax.lax.stop_gradient(
        jnp.take_along_axis(t_sq, inds[:, None, None], axis=1))           # (B,1,3)

    # --- lane-dense operands for the fused reduction kernel ----------------------
    # mesh vertices -> (nV, cols): ONE stacked operator matmul for both mesh sets.
    M_ints_flat = M_pe_ints.reshape(B * nI, nV, 3)
    Vt1 = jnp.transpose(M_pe, (1, 0, 2)).reshape(nV, B * 3)
    Vt2 = jnp.transpose(M_ints_flat, (1, 0, 2)).reshape(nV, B * nI * 3)
    Vt_all = jnp.concatenate([Vt1, Vt2], axis=1)                          # (nV, ncols)
    ncols = Vt_all.shape[1]

    # shape-critic mesh weights laid out over the M_pe columns (zero on ints cols);
    # replaces the old HBM concat shape_feat = [v, M_pe].
    w_M = params["w_shape_M"]                                             # (nV, 3)
    wsel = jnp.concatenate(
        [jnp.tile(w_M, (1, B)), jnp.zeros((nV, ncols - B * 3), w_M.dtype)], axis=1)

    # edge regularizers: gather-diff (dense (nE,nV) edge operator eliminated).
    E0, E1 = E_np[:, 0], E_np[:, 1]
    ev1 = (M_pe[:, E0, :] - M_pe[:, E1, :]).reshape(B, nE * 3)
    ev2 = (M_ints_flat[:, E0, :] - M_ints_flat[:, E1, :]).reshape(B * nI, nE * 3)

    # delta per-face variance operands: per-face vertex sums (tiny gather+add) and
    # static per-vertex face counts; both lane-dense, no (3, N) sublane-waste layout.
    cnt_v = np.zeros((nV,), np.float32)
    np.add.at(cnt_v, F_np.reshape(-1), 1.0)
    cnt = jnp.asarray(np.repeat(cnt_v, 3)[None, :])                       # (1, nV*3)
    face_sum = delta[:, :, F_np, :].sum(axis=3)                           # (B,nI,nF,3)
    d_flat = delta.reshape(B * nI, nV * 3)
    fs_flat = face_sum.reshape(B * nI, nF * 3)

    s = fused_scalar_losses(
        params["laplacian"], Vt_all, wsel, ev1, ev2, d_flat, cnt, fs_flat,
        xi_T, xi_best, xi_best_sg, t_sq, t_best_sg,
        v, params["w_shape_v"], params["w_xit_critic"], B=B)
    lap1_s, lap2_s, edge1_s, edge2_s, dvar_s = s[0], s[1], s[2], s[3], s[4]
    xims_s, tms_s, vsq_s, sadv_s, xadv_s = s[5], s[6], s[7], s[8], s[9]

    # --- mesh regularizers --------------------------------------------------------
    # edge: mean over (batch, edges) of squared edge length;
    # Laplacian: Kato average=True convention: sum ||L v_b||^2 / batch.
    mesh_reg_1 = W_EDGE * edge1_s / (B * nE) + W_LAP * lap1_s / B
    mesh_reg_2 = W_EDGE * edge2_s / (B * nI * nE) + W_LAP * lap2_s / (B * nI)
    # TODO(synk): meshutils.FlattenLoss (dihedral flatness, W_FLAT) not reproducible from reference.
    shape_reg_loss = opts["w_mesh_reg"] * mesh_reg_1
    intermeds_loss = opts["w_mesh_reg"] * mesh_reg_2

    # delta[:, :, F].var(dim=3).sum(-1).mean(): unbiased variance over the 3 face
    # verts, summed over coords, averaged over (B, nI, nF).
    delta_reg_loss = opts["w_delta_reg"] * dvar_s / (B * nI * nF)

    # --- adversarial stand-ins (linear critics; see TODO in kernel) ---------------
    shape_adv_loss = opts["w_shape_adv_loss"] * (sadv_s / B + params["b_shape_critic"])
    xi_T_reg_loss = opts["w_xi_T_adv_loss"] * (xadv_s / B + params["b_xit_critic"])

    # TODO(synk): 'l2' v_regularizer body not defined in reference; mean per-sample squared L2 norm.
    latent_def_reg_v = opts["w_v_reg_cy2"] * vsq_s / B

    reren_loss = 0.0   # rerendered_imgs is None / w_reren_adv_loss < 1e-6

    # --- hypothesis consistency ----------------------------------------------------
    tex_consis_loss = opts["w_hyp_xi_T_match"] * xims_s / (B * NH * dxi)
    translation_consistency_loss = opts["w_hyp_t_match"] * tms_s / (B * NH * 3)

    # cptc_data / adv_cptc_loss are None -> zeros (same gating as the module)
    cptc_v_consis = 0.0
    cptc_xi_T_consis = 0.0
    cptc_teximg_consis = 0.0
    adv_cptc_loss = 0.0

    LOSS = (img_loss + p_img_loss + ms_ssim_loss + delta_reg_loss + shape_adv_loss
            + intermeds_loss + shape_reg_loss + xi_T_reg_loss + reren_loss
            + tex_consis_loss + translation_consistency_loss + rot_div_loss
            + cptc_v_consis + cptc_xi_T_consis + cptc_teximg_consis
            + latent_def_reg_v + adv_cptc_loss)

    stats = {
        'img_recon': img_loss, 'p_img_dist': p_img_loss, 'ms_ssim_loss': ms_ssim_loss,
        'S_adv': shape_adv_loss, 'xi_T_reg': xi_T_reg_loss, 'delta_reg': delta_reg_loss,
        'M_ints_reg': intermeds_loss, 'M_reg_c2': shape_reg_loss,
        'tex_consis': tex_consis_loss, 'trans_consis': translation_consistency_loss,
        'reren_loss': reren_loss, 'rot_negent': rot_div_loss,
        'cptc_v_consis': cptc_v_consis, 'cptc_xi_T_consis': cptc_xi_T_consis,
        'cptc_teximg_consis': cptc_teximg_consis, 'v_reg_cy2': latent_def_reg_v,
        'adv_cptc_loss': adv_cptc_loss,
    }
    return jnp.reshape(LOSS, (1,)), stats


# --------------------------------------------------------------------------
# Pure-JAX reference (same stand-ins/gating) for a correctness self-check.
# --------------------------------------------------------------------------
def _reference_total(opts, E_np, F_np, params, I, I_hat, M_pe, xi_T, pose_probs,
                     v, delta, M_pe_ints, t_inferred):
    B, dim_v = v.shape
    BNH, NC, H, W = I_hat.shape
    NH = BNH // B
    nV = M_pe.shape[1]
    nI = delta.shape[1]
    I_hat5 = I_hat.reshape(B, NH, NC, H, W)

    per = jnp.sum(jnp.mean(jnp.abs(I[:, None] - I_hat5), axis=(3, 4)), axis=2)
    img = opts["w_img_recon_l1"] * jnp.mean(jnp.sum(pose_probs * per, axis=1))

    def mesh_reg(Vb):
        bb = Vb.shape[0]
        ev = Vb[:, E_np[:, 0], :] - Vb[:, E_np[:, 1], :]
        LE = W_EDGE * jnp.mean(jnp.sum(ev ** 2, axis=-1))
        LV = jnp.einsum('ij,bjc->bic', params["laplacian"], Vb)
        LL = W_LAP * jnp.sum(LV ** 2) / bb
        return LE + LL

    shape_reg = opts["w_mesh_reg"] * mesh_reg(M_pe)
    interm = opts["w_mesh_reg"] * mesh_reg(M_pe_ints.reshape(B * nI, nV, 3))

    g = delta[:, :, F_np, :]
    dvar = opts["w_delta_reg"] * jnp.mean(jnp.sum(jnp.var(g, axis=3, ddof=1), axis=-1))

    inds = jnp.argmax(pose_probs, axis=1)
    xib = jnp.take_along_axis(xi_T, inds[:, None, None], axis=1)
    tsq = t_inferred[..., 0]
    tb = jnp.take_along_axis(tsq, inds[:, None, None], axis=1)

    sadv = opts["w_shape_adv_loss"] * (
        jnp.mean(v @ params["w_shape_v"][0]
                 + jnp.einsum('bvc,vc->b', M_pe, params["w_shape_M"]))
        + params["b_shape_critic"])
    xadv = opts["w_xi_T_adv_loss"] * (
        jnp.mean(xib[:, 0, :] @ params["w_xit_critic"][0]) + params["b_xit_critic"])
    texc = opts["w_hyp_xi_T_match"] * jnp.mean((xib - xi_T) ** 2)
    tc = opts["w_hyp_t_match"] * jnp.mean((tb - tsq) ** 2)
    vreg = opts["w_v_reg_cy2"] * jnp.mean(jnp.sum(v ** 2, axis=-1))
    return img + shape_reg + interm + dvar + sadv + xadv + texc + tc + vreg


# --------------------------------------------------------------------------
if __name__ == "__main__":
    B, NH, NC, H, W = 2, 4, 4, 32, 32
    nI, dim_v, dxi = 2, 32, 16

    # Small closed mesh (octahedron): 6 vertices, 8 faces, 12 edges.
    F_np = np.array([[0, 2, 4], [2, 1, 4], [1, 3, 4], [3, 0, 4],
                     [2, 0, 5], [1, 2, 5], [3, 1, 5], [0, 3, 5]], np.int32)
    nV = int(F_np.max()) + 1
    edge_set = set()
    for f in F_np:
        for a, b in ((0, 1), (1, 2), (2, 0)):
            edge_set.add(tuple(sorted((int(f[a]), int(f[b])))))
    E_np = np.array(sorted(edge_set), np.int32)

    # Uniform graph Laplacian (Kato/meshutils style): L[i,i]=1, L[i,j]=-1/deg(i).
    Ld = np.zeros((nV, nV), np.float32)
    for (a, b) in E_np:
        Ld[a, b] = -1.0
        Ld[b, a] = -1.0
    deg = -Ld.sum(1)
    Ld[np.arange(nV), np.arange(nV)] = deg
    Ld = Ld / deg[:, None]

    key = jax.random.PRNGKey(0)
    ks = jax.random.split(key, 12)
    I = jax.random.uniform(ks[0], (B, NC, H, W), jnp.float32, -1.0, 1.0)
    I_hat = jax.random.uniform(ks[1], (B * NH, NC, H, W), jnp.float32, -1.0, 1.0)
    M_pe = jax.random.normal(ks[2], (B, nV, 3), jnp.float32) * 0.5
    xi_T = jax.random.normal(ks[3], (B, NH, dxi), jnp.float32)
    pose_probs = jax.nn.softmax(jax.random.normal(ks[4], (B, NH), jnp.float32), axis=-1)
    v = jax.random.normal(ks[5], (B, dim_v), jnp.float32)
    delta = jax.random.normal(ks[6], (B, nI, nV, 3), jnp.float32) * 0.1
    M_pe_ints = jax.random.normal(ks[7], (B, nI, nV, 3), jnp.float32) * 0.5
    t_inferred = jax.random.normal(ks[8], (B, NH, 3, 1), jnp.float32)

    params = {
        "laplacian": jnp.asarray(Ld),
        "w_shape_v": jax.random.normal(ks[9], (1, dim_v), jnp.float32) * 0.1,
        "w_shape_M": jax.random.normal(ks[11], (nV, 3), jnp.float32) * 0.1,
        "b_shape_critic": jnp.zeros((), jnp.float32),
        "w_xit_critic": jax.random.normal(ks[10], (1, dxi), jnp.float32) * 0.1,
        "b_xit_critic": jnp.zeros((), jnp.float32),
    }

    opts = {
        "w_img_recon_l1": 1.0, "w_shape_adv_loss": 0.5, "w_xi_T_adv_loss": 0.5,
        "w_mesh_reg": 1.0, "w_delta_reg": 1.0, "w_R_negent": 0.1,
        "w_v_reg_cy2": 0.01, "w_hyp_xi_T_match": 1.0, "w_hyp_t_match": 1.0,
        # weights below zero-out their branches exactly as the module's gating does:
        "w_img_recon_pd": 0.0, "w_img_recon_ms": 0.0, "w_reren_adv_loss": 0.0,
    }

    # chunk_rows=8 -> 4 pixel-chunks per batch element at this demo size,
    # exercising the accumulate-across-"arbitrary"-axis path.
    fwd = jax.jit(functools.partial(cycle2_loss_forward, opts, E_np, F_np,
                                    img_chunk_rows=8))
    loss, stats = fwd(params, I, I_hat, M_pe, xi_T, pose_probs, v, delta,
                      M_pe_ints, t_inferred)
    loss = jax.block_until_ready(loss)

    ref = _reference_total(opts, E_np, F_np, params, I, I_hat, M_pe, xi_T,
                           pose_probs, v, delta, M_pe_ints, t_inferred)
    np.testing.assert_allclose(np.asarray(loss)[0], float(ref), rtol=2e-3, atol=1e-4)
    assert np.isfinite(np.asarray(loss)).all()
    print("KERNEL_OK")
</pallas_src>

<mosaic_0001>
module attributes {stable_mosaic.version = 11 : i64} {
  func.func @_img_l1_kernel(%arg0: i32, %arg1: i32, %arg2: memref<1x4x1xf32, #tpu.memory_space<vmem>>, %arg3: memref<1x1x8x128xf32, #tpu.memory_space<vmem>>, %arg4: memref<1x4x8x128xf32, #tpu.memory_space<vmem>>, %arg5: memref<1x1x1xf32, #tpu.memory_space<vmem>>) attributes {dimension_semantics = [#tpu.dimension_semantics<parallel>, #tpu.dimension_semantics<arbitrary>], iteration_bounds = array<i64: 2, 4>, scalar_prefetch = 0 : i64, scratch_operands = 0 : i64, tpu.core_type = #tpu.core_type<tc>, window_params = [{transform_indices = @transform_0, window_bounds = array<i64: 1, 4, 1>}, {transform_indices = @transform_1, window_bounds = array<i64: 1, 1, 8, 128>}, {transform_indices = @transform_2, window_bounds = array<i64: 1, 4, 8, 128>}, {transform_indices = @transform_3, window_bounds = array<i64: 1, 1, 1>}]} {
    %c0_i32 = arith.constant 0 : i32
    %0 = arith.cmpi eq, %arg1, %c0_i32 : i32
    %1 = arith.extui %0 : i1 to i32
    %c0_i32_0 = arith.constant 0 : i32
    %2 = arith.cmpi ne, %1, %c0_i32_0 : i32
    scf.if %2 {
      %cst_19 = arith.constant 0.000000e+00 : f32
      %24 = vector.broadcast %cst_19 : f32 to vector<1x1x1xf32>
      %c0_20 = arith.constant 0 : index
      %c0_21 = arith.constant 0 : index
      %c0_22 = arith.constant 0 : index
      %25 = vector.load %arg5[%c0_20, %c0_21, %c0_22] : memref<1x1x1xf32, #tpu.memory_space<vmem>>, vector<1x1x1xf32>
      tpu.vector_store %arg5[%c0_20, %c0_21, %c0_22], %24 {strides = array<i32>} : memref<1x1x1xf32, #tpu.memory_space<vmem>>, vector<1x1x1xf32>,
    } else {
    }
    %c0 = arith.constant 0 : index
    %c0_1 = arith.constant 0 : index
    %c0_2 = arith.constant 0 : index
    %c0_3 = arith.constant 0 : index
    %3 = vector.load %arg4[%c0, %c0_1, %c0_2, %c0_3] : memref<1x4x8x128xf32, #tpu.memory_space<vmem>>, vector<1x4x8x128xf32>
    %4 = vector.shape_cast %3 : vector<1x4x8x128xf32> to vector<4x8x128xf32>
    %c0_4 = arith.constant 0 : index
    %c0_5 = arith.constant 0 : index
    %c0_6 = arith.constant 0 : index
    %c0_7 = arith.constant 0 : index
    %5 = vector.load %arg3[%c0_4, %c0_5, %c0_6, %c0_7] : memref<1x1x8x128xf32, #tpu.memory_space<vmem>>, vector<1x1x8x128xf32>
    %6 = vector.shape_cast %5 : vector<1x1x8x128xf32> to vector<1x8x128xf32>
    %7 = vector.broadcast %6 : vector<1x8x128xf32> to vector<4x8x128xf32>
    %8 = arith.subf %4, %7 : vector<4x8x128xf32>
    %9 = math.absf %8 : vector<4x8x128xf32>
    %cst = arith.constant dense<0.000000e+00> : vector<4x8xf32>
    %10 = vector.multi_reduction <add>, %9, %cst [2] : vector<4x8x128xf32> to vector<4x8xf32>
    %cst_8 = arith.constant dense<0.000000e+00> : vector<4xf32>
    %11 = vector.multi_reduction <add>, %10, %cst_8 [1] : vector<4x8xf32> to vector<4xf32>
    %12 = vector.shape_cast %11 : vector<4xf32> to vector<4x1xf32>
    %c0_9 = arith.constant 0 : index
    %c0_10 = arith.constant 0 : index
    %c0_11 = arith.constant 0 : index
    %13 = vector.load %arg5[%c0_9, %c0_10, %c0_11] : memref<1x1x1xf32, #tpu.memory_space<vmem>>, vector<1x1x1xf32>
    %c0_12 = arith.constant 0 : index
    %c0_13 = arith.constant 0 : index
    %c0_14 = arith.constant 0 : index
    %14 = vector.load %arg2[%c0_12, %c0_13, %c0_14] : memref<1x4x1xf32, #tpu.memory_space<vmem>>, vector<1x4x1xf32>
    %15 = vector.shape_cast %14 : vector<1x4x1xf32> to vector<4x1xf32>
    %16 = arith.mulf %12, %15 : vector<4x1xf32>
    %17 = vector.shape_cast %16 : vector<4x1xf32> to vector<1x4x1xf32>
    %cst_15 = arith.constant dense<0.000000e+00> : vector<1xf32>
    %18 = vector.multi_reduction <add>, %17, %cst_15 [1, 2] : vector<1x4x1xf32> to vector<1xf32>
    %19 = vector.shape_cast %18 : vector<1xf32> to vector<1x1x1xf32>
    %20 = vector.extract %19[0, 0, 0] : f32 from vector<1x1x1xf32>
    %21 = vector.broadcast %20 : f32 to vector<1x1x1xf32>
    %22 = arith.addf %13, %21 : vector<1x1x1xf32>
    %c0_16 = arith.constant 0 : index
    %c0_17 = arith.constant 0 : index
    %c0_18 = arith.constant 0 : index
    %23 = vector.load %arg5[%c0_16, %c0_17, %c0_18] : memref<1x1x1xf32, #tpu.memory_space<vmem>>, vector<1x1x1xf32>
    tpu.vector_store %arg5[%c0_16, %c0_17, %c0_18], %22 {strides = array<i32>} : memref<1x1x1xf32, #tpu.memory_space<vmem>>, vector<1x1x1xf32>,
    return
  }
  func.func @transform_0(%arg0: i32, %arg1: i32) -> (i32, i32, i32) {
    %c0_i32 = arith.constant 0 : i32
    %c0_i32_0 = arith.constant 0 : i32
    %c0_i32_1 = arith.constant 0 : i32
    return %arg0, %c0_i32, %c0_i32_0 : i32, i32, i32
  }
  func.func @transform_1(%arg0: i32, %arg1: i32) -> (i32, i32, i32, i32) {
    %c0_i32 = arith.constant 0 : i32
    %c0_i32_0 = arith.constant 0 : i32
    %c0_i32_1 = arith.constant 0 : i32
    return %arg0, %c0_i32, %arg1, %c0_i32_0 : i32, i32, i32, i32
  }
  func.func @transform_2(%arg0: i32, %arg1: i32) -> (i32, i32, i32, i32) {
    %c0_i32 = arith.constant 0 : i32
    %c0_i32_0 = arith.constant 0 : i32
    %c0_i32_1 = arith.constant 0 : i32
    return %arg0, %c0_i32, %arg1, %c0_i32_0 : i32, i32, i32, i32
  }
  func.func @transform_3(%arg0: i32, %arg1: i32) -> (i32, i32, i32) {
    %c0_i32 = arith.constant 0 : i32
    %c0_i32_0 = arith.constant 0 : i32
    %c0_i32_1 = arith.constant 0 : i32
    return %arg0, %c0_i32, %c0_i32_0 : i32, i32, i32
  }
}

module attributes {stable_mosaic.version = 11 : i64} {
  func.func @kernel(%arg0: memref<6x6xf32, #tpu.memory_space<vmem>>, %arg1: memref<6x18xf32, #tpu.memory_space<vmem>>, %arg2: memref<6x18xf32, #tpu.memory_space<vmem>>, %arg3: memref<2x36xf32, #tpu.memory_space<vmem>>, %arg4: memref<4x36xf32, #tpu.memory_space<vmem>>, %arg5: memref<4x18xf32, #tpu.memory_space<vmem>>, %arg6: memref<1x18xf32, #tpu.memory_space<vmem>>, %arg7: memref<4x24xf32, #tpu.memory_space<vmem>>, %arg8: memref<2x4x16xf32, #tpu.memory_space<vmem>>, %arg9: memref<2x1x16xf32, #tpu.memory_space<vmem>>, %arg10: memref<2x1x16xf32, #tpu.memory_space<vmem>>, %arg11: memref<2x4x3xf32, #tpu.memory_space<vmem>>, %arg12: memref<2x1x3xf32, #tpu.memory_space<vmem>>, %arg13: memref<2x32xf32, #tpu.memory_space<vmem>>, %arg14: memref<1x32xf32, #tpu.memory_space<vmem>>, %arg15: memref<1x16xf32, #tpu.memory_space<vmem>>, %arg16: memref<1x128xf32, #tpu.memory_space<vmem>>) attributes {dimension_semantics = [], scalar_prefetch = 0 : i64, scratch_operands = 0 : i64, tpu.core_type = #tpu.core_type<tc>} {
    %c0 = arith.constant 0 : index
    %c0_0 = arith.constant 0 : index
    %0 = vector.load %arg1[%c0, %c0_0] : memref<6x18xf32, #tpu.memory_space<vmem>>, vector<6x18xf32>
    %c0_1 = arith.constant 0 : index
    %c0_2 = arith.constant 0 : index
    %1 = vector.load %arg0[%c0_1, %c0_2] : memref<6x6xf32, #tpu.memory_space<vmem>>, vector<6x6xf32>
    %cst = arith.constant dense<0.000000e+00> : vector<6x18xf32>
    %2 = tpu.matmul %1, %0, %cst {dimension_numbers = #tpu.dot_dimension_numbers<[1], [0], [0], [1], [0, 0, 1, 1], [], []>} : vector<6x6xf32>, vector<6x18xf32>, vector<6x18xf32> -> vector<6x18xf32>
    %3 = arith.mulf %2, %2 : vector<6x18xf32>
    %4 = tpu.iota {dimensions = array<i32: 1>} : vector<1x18xi32>
    %c6_i32 = arith.constant 6 : i32
    %5 = vector.broadcast %c6_i32 : i32 to vector<1x18xi32>
    %6 = arith.cmpi slt, %4, %5 : vector<1x18xi32>
    %7 = arith.extui %6 : vector<1x18xi1> to vector<1x18xi32>
    %8 = arith.sitofp %7 : vector<1x18xi32> to vector<1x18xf32>
    %9 = vector.broadcast %8 : vector<1x18xf32> to vector<6x18xf32>
    %10 = arith.mulf %3, %9 : vector<6x18xf32>
    %11 = vector.shape_cast %10 : vector<6x18xf32> to vector<1x6x18xf32>
    %cst_3 = arith.constant dense<0.000000e+00> : vector<1xf32>
    %12 = vector.multi_reduction <add>, %11, %cst_3 [1, 2] : vector<1x6x18xf32> to vector<1xf32>
    %13 = vector.shape_cast %12 : vector<1xf32> to vector<1x1x1xf32>
    %14 = vector.extract %13[0, 0, 0] : f32 from vector<1x1x1xf32>
    %15 = vector.shape_cast %3 : vector<6x18xf32> to vector<1x6x18xf32>
    %cst_4 = arith.constant dense<0.000000e+00> : vector<1xf32>
    %16 = vector.multi_reduction <add>, %15, %cst_4 [1, 2] : vector<1x6x18xf32> to vector<1xf32>
    %17 = vector.shape_cast %16 : vector<1xf32> to vector<1x1x1xf32>
    %18 = vector.extract %17[0, 0, 0] : f32 from vector<1x1x1xf32>
    %19 = arith.subf %18, %14 : f32
    %c0_5 = arith.constant 0 : index
    %c0_6 = arith.constant 0 : index
    %20 = vector.load %arg3[%c0_5, %c0_6] : memref<2x36xf32, #tpu.memory_space<vmem>>, vector<2x36xf32>
    %c0_7 = arith.constant 0 : index
    %c0_8 = arith.constant 0 : index
    %21 = vector.load %arg4[%c0_7, %c0_8] : memref<4x36xf32, #tpu.memory_space<vmem>>, vector<4x36xf32>
    %22 = arith.mulf %20, %20 : vector<2x36xf32>
    %23 = vector.shape_cast %22 : vector<2x36xf32> to vector<1x2x36xf32>
    %cst_9 = arith.constant dense<0.000000e+00> : vector<1xf32>
    %24 = vector.multi_reduction <add>, %23, %cst_9 [1, 2] : vector<1x2x36xf32> to vector<1xf32>
    %25 = vector.shape_cast %24 : vector<1xf32> to vector<1x1x1xf32>
    %26 = vector.extract %25[0, 0, 0] : f32 from vector<1x1x1xf32>
    %27 = arith.mulf %21, %21 : vector<4x36xf32>
    %28 = vector.shape_cast %27 : vector<4x36xf32> to vector<1x4x36xf32>
    %cst_10 = arith.constant dense<0.000000e+00> : vector<1xf32>
    %29 = vector.multi_reduction <add>, %28, %cst_10 [1, 2] : vector<1x4x36xf32> to vector<1xf32>
    %30 = vector.shape_cast %29 : vector<1xf32> to vector<1x1x1xf32>
    %31 = vector.extract %30[0, 0, 0] : f32 from vector<1x1x1xf32>
    %c0_11 = arith.constant 0 : index
    %c0_12 = arith.constant 0 : index
    %32 = vector.load %arg5[%c0_11, %c0_12] : memref<4x18xf32, #tpu.memory_space<vmem>>, vector<4x18xf32>
    %c0_13 = arith.constant 0 : index
    %c0_14 = arith.constant 0 : index
    %33 = vector.load %arg7[%c0_13, %c0_14] : memref<4x24xf32, #tpu.memory_space<vmem>>, vector<4x24xf32>
    %34 = arith.mulf %32, %32 : vector<4x18xf32>
    %c0_15 = arith.constant 0 : index
    %c0_16 = arith.constant 0 : index
    %35 = vector.load %arg6[%c0_15, %c0_16] : memref<1x18xf32, #tpu.memory_space<vmem>>, vector<1x18xf32>
    %36 = vector.broadcast %35 : vector<1x18xf32> to vector<4x18xf32>
    %37 = arith.mulf %34, %36 : vector<4x18xf32>
    %38 = vector.shape_cast %37 : vector<4x18xf32> to vector<1x4x18xf32>
    %cst_17 = arith.constant dense<0.000000e+00> : vector<1xf32>
    %39 = vector.multi_reduction <add>, %38, %cst_17 [1, 2] : vector<1x4x18xf32> to vector<1xf32>
    %40 = vector.shape_cast %39 : vector<1xf32> to vector<1x1x1xf32>
    %41 = vector.extract %40[0, 0, 0] : f32 from vector<1x1x1xf32>
    %42 = arith.mulf %33, %33 : vector<4x24xf32>
    %43 = vector.shape_cast %42 : vector<4x24xf32> to vector<1x4x24xf32>
    %cst_18 = arith.constant dense<0.000000e+00> : vector<1xf32>
    %44 = vector.multi_reduction <add>, %43, %cst_18 [1, 2] : vector<1x4x24xf32> to vector<1xf32>
    %45 = vector.shape_cast %44 : vector<1xf32> to vector<1x1x1xf32>
    %46 = vector.extract %45[0, 0, 0] : f32 from vector<1x1x1xf32>
    %cst_19 = arith.constant 0.333333343 : f32
    %47 = arith.mulf %46, %cst_19 : f32
    %48 = arith.subf %41, %47 : f32
    %cst_20 = arith.constant 5.000000e-01 : f32
    %49 = arith.mulf %cst_20, %48 : f32
    %c0_21 = arith.constant 0 : index
    %c0_22 = arith.constant 0 : index
    %c0_23 = arith.constant 0 : index
    %50 = vector.load %arg8[%c0_21, %c0_22, %c0_23] : memref<2x4x16xf32, #tpu.memory_space<vmem>>, vector<2x4x16xf32>
    %c0_24 = arith.constant 0 : index
    %c0_25 = arith.constant 0 : index
    %c0_26 = arith.constant 0 : index
    %51 = vector.load %arg10[%c0_24, %c0_25, %c0_26] : memref<2x1x16xf32, #tpu.memory_space<vmem>>, vector<2x1x16xf32>
    %52 = vector.broadcast %51 : vector<2x1x16xf32> to vector<2x4x16xf32>
    %53 = arith.subf %50, %52 : vector<2x4x16xf32>
    %54 = arith.mulf %53, %53 : vector<2x4x16xf32>
    %55 = vector.shape_cast %54 : vector<2x4x16xf32> to vector<1x2x4x16xf32>
    %cst_27 = arith.constant dense<0.000000e+00> : vector<1xf32>
    %56 = vector.multi_reduction <add>, %55, %cst_27 [1, 2, 3] : vector<1x2x4x16xf32> to vector<1xf32>
    %57 = vector.shape_cast %56 : vector<1xf32> to vector<1x1x1x1xf32>
    %58 = vector.extract %57[0, 0, 0, 0] : f32 from vector<1x1x1x1xf32>
    %c0_28 = arith.constant 0 : index
    %c0_29 = arith.constant 0 : index
    %c0_30 = arith.constant 0 : index
    %59 = vector.load %arg11[%c0_28, %c0_29, %c0_30] : memref<2x4x3xf32, #tpu.memory_space<vmem>>, vector<2x4x3xf32>
    %c0_31 = arith.constant 0 : index
    %c0_32 = arith.constant 0 : index
    %c0_33 = arith.constant 0 : index
    %60 = vector.load %arg12[%c0_31, %c0_32, %c0_33] : memref<2x1x3xf32, #tpu.memory_space<vmem>>, vector<2x1x3xf32>
    %61 = vector.broadcast %60 : vector<2x1x3xf32> to vector<2x4x3xf32>
    %62 = arith.subf %59, %61 : vector<2x4x3xf32>
    %63 = arith.mulf %62, %62 : vector<2x4x3xf32>
    %64 = vector.shape_cast %63 : vector<2x4x3xf32> to vector<1x2x4x3xf32>
    %cst_34 = arith.constant dense<0.000000e+00> : vector<1xf32>
    %65 = vector.multi_reduction <add>, %64, %cst_34 [1, 2, 3] : vector<1x2x4x3xf32> to vector<1xf32>
    %66 = vector.shape_cast %65 : vector<1xf32> to vector<1x1x1x1xf32>
    %67 = vector.extract %66[0, 0, 0, 0] : f32 from vector<1x1x1x1xf32>
    %c0_35 = arith.constant 0 : index
    %c0_36 = arith.constant 0 : index
    %68 = vector.load %arg13[%c0_35, %c0_36] : memref<2x32xf32, #tpu.memory_space<vmem>>, vector<2x32xf32>
    %69 = arith.mulf %68, %68 : vector<2x32xf32>
    %70 = vector.shape_cast %69 : vector<2x32xf32> to vector<1x2x32xf32>
    %cst_37 = arith.constant dense<0.000000e+00> : vector<1xf32>
    %71 = vector.multi_reduction <add>, %70, %cst_37 [1, 2] : vector<1x2x32xf32> to vector<1xf32>
    %72 = vector.shape_cast %71 : vector<1xf32> to vector<1x1x1xf32>
    %73 = vector.extract %72[0, 0, 0] : f32 from vector<1x1x1xf32>
    %c0_38 = arith.constant 0 : index
    %c0_39 = arith.constant 0 : index
    %74 = vector.load %arg13[%c0_38, %c0_39] : memref<2x32xf32, #tpu.memory_space<vmem>>, vector<2x32xf32>
    %c0_40 = arith.constant 0 : index
    %c0_41 = arith.constant 0 : index
    %75 = vector.load %arg14[%c0_40, %c0_41] : memref<1x32xf32, #tpu.memory_space<vmem>>, vector<1x32xf32>
    %76 = vector.broadcast %75 : vector<1x32xf32> to vector<2x32xf32>
    %77 = arith.mulf %74, %76 : vector<2x32xf32>
    %78 = vector.shape_cast %77 : vector<2x32xf32> to vector<1x2x32xf32>
    %cst_42 = arith.constant dense<0.000000e+00> : vector<1xf32>
    %79 = vector.multi_reduction <add>, %78, %cst_42 [1, 2] : vector<1x2x32xf32> to vector<1xf32>
    %80 = vector.shape_cast %79 : vector<1xf32> to vector<1x1x1xf32>
    %81 = vector.extract %80[0, 0, 0] : f32 from vector<1x1x1xf32>
    %c0_43 = arith.constant 0 : index
    %c0_44 = arith.constant 0 : index
    %82 = vector.load %arg2[%c0_43, %c0_44] : memref<6x18xf32, #tpu.memory_space<vmem>>, vector<6x18xf32>
    %83 = arith.mulf %0, %82 : vector<6x18xf32>
    %84 = vector.shape_cast %83 : vector<6x18xf32> to vector<1x6x18xf32>
    %cst_45 = arith.constant dense<0.000000e+00> : vector<1xf32>
    %85 = vector.multi_reduction <add>, %84, %cst_45 [1, 2] : vector<1x6x18xf32> to vector<1xf32>
    %86 = vector.shape_cast %85 : vector<1xf32> to vector<1x1x1xf32>
    %87 = vector.extract %86[0, 0, 0] : f32 from vector<1x1x1xf32>
    %88 = arith.addf %81, %87 : f32
    %c0_46 = arith.constant 0 : index
    %c0_47 = arith.constant 0 : index
    %c0_48 = arith.constant 0 : index
    %89 = vector.load %arg9[%c0_46, %c0_47, %c0_48] : memref<2x1x16xf32, #tpu.memory_space<vmem>>, vector<2x1x16xf32>
    %c0_49 = arith.constant 0 : index
    %c0_50 = arith.constant 0 : index
    %90 = vector.load %arg15[%c0_49, %c0_50] : memref<1x16xf32, #tpu.memory_space<vmem>>, vector<1x16xf32>
    %91 = vector.shape_cast %90 : vector<1x16xf32> to vector<1x1x16xf32>
    %92 = vector.broadcast %91 : vector<1x1x16xf32> to vector<2x1x16xf32>
    %93 = arith.mulf %89, %92 : vector<2x1x16xf32>
    %94 = vector.shape_cast %93 : vector<2x1x16xf32> to vector<1x2x1x16xf32>
    %cst_51 = arith.constant dense<0.000000e+00> : vector<1xf32>
    %95 = vector.multi_reduction <add>, %94, %cst_51 [1, 2, 3] : vector<1x2x1x16xf32> to vector<1xf32>
    %96 = vector.shape_cast %95 : vector<1xf32> to vector<1x1x1x1xf32>
    %97 = vector.extract %96[0, 0, 0, 0] : f32 from vector<1x1x1x1xf32>
    %98 = tpu.iota {dimensions = array<i32: 1>} : vector<1x128xi32>
    %cst_52 = arith.constant 0.000000e+00 : f32
    %99 = vector.broadcast %cst_52 : f32 to vector<1x128xf32>
    %c0_i32 = arith.constant 0 : i32
    %100 = vector.broadcast %c0_i32 : i32 to vector<1x128xi32>
    %101 = arith.cmpi eq, %98, %100 : vector<1x128xi32>
    %102 = vector.broadcast %14 : f32 to vector<1x128xf32>
    %103 = arith.select %101, %102, %99 : vector<1x128xi1>, vector<1x128xf32>
    %c1_i32 = arith.constant 1 : i32
    %104 = vector.broadcast %c1_i32 : i32 to vector<1x128xi32>
    %105 = arith.cmpi eq, %98, %104 : vector<1x128xi32>
    %106 = vector.broadcast %19 : f32 to vector<1x128xf32>
    %107 = arith.select %105, %106, %103 : vector<1x128xi1>, vector<1x128xf32>
    %c2_i32 = arith.constant 2 : i32
    %108 = vector.broadcast %c2_i32 : i32 to vector<1x128xi32>
    %109 = arith.cmpi eq, %98, %108 : vector<1x128xi32>
    %110 = vector.broadcast %26 : f32 to vector<1x128xf32>
    %111 = arith.select %109, %110, %107 : vector<1x128xi1>, vector<1x128xf32>
    %c3_i32 = arith.constant 3 : i32
    %112 = vector.broadcast %c3_i32 : i32 to vector<1x128xi32>
    %113 = arith.cmpi eq, %98, %112 : vector<1x128xi32>
    %114 = vector.broadcast %31 : f32 to vector<1x128xf32>
    %115 = arith.select %113, %114, %111 : vector<1x128xi1>, vector<1x128xf32>
    %c4_i32 = arith.constant 4 : i32
    %116 = vector.broadcast %c4_i32 : i32 to vector<1x128xi32>
    %117 = arith.cmpi eq, %98, %116 : vector<1x128xi32>
    %118 = vector.broadcast %49 : f32 to vector<1x128xf32>
    %119 = arith.select %117, %118, %115 : vector<1x128xi1>, vector<1x128xf32>
    %c5_i32 = arith.constant 5 : i32
    %120 = vector.broadcast %c5_i32 : i32 to vector<1x128xi32>
    %121 = arith.cmpi eq, %98, %120 : vector<1x128xi32>
    %122 = vector.broadcast %58 : f32 to vector<1x128xf32>
    %123 = arith.select %121, %122, %119 : vector<1x128xi1>, vector<1x128xf32>
    %c6_i32_53 = arith.constant 6 : i32
    %124 = vector.broadcast %c6_i32_53 : i32 to vector<1x128xi32>
    %125 = arith.cmpi eq, %98, %124 : vector<1x128xi32>
    %126 = vector.broadcast %67 : f32 to vector<1x128xf32>
    %127 = arith.select %125, %126, %123 : vector<1x128xi1>, vector<1x128xf32>
    %c7_i32 = arith.constant 7 : i32
    %128 = vector.broadcast %c7_i32 : i32 to vector<1x128xi32>
    %129 = arith.cmpi eq, %98, %128 : vector<1x128xi32>
    %130 = vector.broadcast %73 : f32 to vector<1x128xf32>
    %131 = arith.select %129, %130, %127 : vector<1x128xi1>, vector<1x128xf32>
    %c8_i32 = arith.constant 8 : i32
    %132 = vector.broadcast %c8_i32 : i32 to vector<1x128xi32>
    %133 = arith.cmpi eq, %98, %132 : vector<1x128xi32>
    %134 = vector.broadcast %88 : f32 to vector<1x128xf32>
    %135 = arith.select %133, %134, %131 : vector<1x128xi1>, vector<1x128xf32>
    %c9_i32 = arith.constant 9 : i32
    %136 = vector.broadcast %c9_i32 : i32 to vector<1x128xi32>
    %137 = arith.cmpi eq, %98, %136 : vector<1x128xi32>
    %138 = vector.broadcast %97 : f32 to vector<1x128xf32>
    %139 = arith.select %137, %138, %135 : vector<1x128xi1>, vector<1x128xf32>
    %c0_54 = arith.constant 0 : index
    %c0_55 = arith.constant 0 : index
    %140 = vector.load %arg16[%c0_54, %c0_55] : memref<1x128xf32, #tpu.memory_space<vmem>>, vector<1x128xf32>
    tpu.vector_store %arg16[%c0_54, %c0_55], %139 {strides = array<i32>} : memref<1x128xf32, #tpu.memory_space<vmem>>, vector<1x128xf32>,
    return
  }
}

</mosaic_0001>

<llo_original>
// kernel: tile.9
$region0: #{tile.9}
  %s0 = inlined_call_operand.vmem [shape: f32[6,2,3], index: 0, kind: input, shape index: {}]
  %s1 = inlined_call_operand.vmem [shape: f32[6,6], index: 1, kind: output, shape index: {}]
  $region1: #{tile.9} parent=0
    #allocation0 [shape = 'u8[8192]{0}', space=vmem, size = 0x2000, scoped, tag = 'scoped mem for input reshape']
    %s3 = ssub.s32 16, 1
    %s4 = scalar_lea.vmem %s0, 4
    %v5 = vld [vmem:[%s4] sm:%s3]
    %s6 = scalar_lea.vmem [#allocation0], 8
    %7 = vst [vmem:[%s6] sm:%s3] %v5
    %v8 = vld [vmem:[%s0] sm:%s3]
    %9 = vst [vmem:[#allocation0] sm:%s3] %v8
    %v10 = vld [vmem:[#allocation0] sm:$0x7]
    %vm11 = vcmask 48128
    %12 = vst.msk [vmem:[%s1] sm:$0x7] %vm11, %v10
    %s13 = scalar_lea.vmem [#allocation0], 8
    %v14 = vld [vmem:[%s13] sm:$0x7]
    %vm15 = vcmask 48128
    %s16 = scalar_lea.vmem %s1, 3
    %17 = vst.msk [vmem:[%s16] sm:$0x7] %vm15, %v14

// kernel: cycle2_loss_forward.2
$region0: #{cycle2_loss_forward.2}
  #allocation0 [shape = 'u32[]', space=smem, size = 0x4, offset = 0x4, fixed_abs, tag = 'smem constant byte address 0x4 - core index']
  #allocation1 [shape = 'u32[72,128]{1,0:T(1,128)}', space=vmem, size = 0x9000, scoped, tag = 'internal scratch']
  %s0 = inlined_call_operand.vmem [shape: f32[2,4,1], index: 0, kind: input, shape index: {}]
  %s1 = inlined_call_operand.vmem [shape: f32[2,1,32,128], index: 1, kind: input, shape index: {}]
  %s2 = inlined_call_operand.vmem [shape: f32[2,4,32,128], index: 2, kind: input, shape index: {}]
  %s3 = inlined_call_operand.vmem [shape: f32[2,1,1], index: 3, kind: output, shape index: {}]
  %s4 = sld [smem:[#allocation0]]
  $region87: #{cycle2_loss_forward.2} parent=0
    _
  %s6 = ssub.s32 1, %s4
  %s7 = scalar_select 0, %s6, %s4
  $region1: #{cycle2_loss_forward.2} parent=0
    #allocation2 [shape = 'u8[32768]{0}', space=vmem, size = 0x8000, scoped, tag = 'input window, operand 2']
    loop: start=0, step=1, limit=10
    $region2: #{cycle2_loss_forward.2} parent=1 // loop_pre_header
      _
    $region3: #{cycle2_loss_forward.2} parent=1 // loop_header
      %s9 = sphi 0, %s13
      %p10 = scmp.ge.s32.totalorder %s9, 10
      %s16 = sphi 0, %s28
      %s17 = sphi 0, %s24
      %s18 = sphi 0, %s16
      %s19 = sphi 0, %s17
      %s20 = sphi 0, %s18
      %s21 = sphi 0, %s19
      %s31 = sphi 0, %s33
      %s34 = sphi 0, %s31
      %s35 = sphi 0, %s34
      %s51 = sphi 0, %s35
      %s59 = sphi 0, %s61
      %s62 = sphi 0, %s59
      %s63 = sphi 0, %s62
      %s79 = sphi 0, %s63
      %s87 = sphi 0, %s89
      %s90 = sphi 0, %s87
      %s91 = sphi 0, %s90
      %s107 = sphi 0, %s91
      %s113 = sphi 0, %s115
      %s116 = sphi 0, %s113
      %s117 = sphi 0, %s116
      %s133 = sphi 0, %s117
    $region4: #{cycle2_loss_forward.2} parent=1 // loop_header_branch
      %12 = sbr.rel (%p10) target = $region8
    $region5: #{cycle2_loss_forward.2} parent=1 // loop_body
      %s14 = ssub.s32 %s9, 1
      %s15 = ssub.s32 %s9, 2
      %s22 = sadd.s32 1, %s17
      %p23 = scmp.ge.s32.totalorder %s22, 4
      %s24 = scalar_select %p23, 0, %s22
      %s25 = sadd.s32 1, %s16
      %s26 = scalar_select %p23, %s25, %s16
      %p27 = scmp.ge.s32.totalorder %s26, 2
      %s28 = scalar_select %p27, 0, %s26
      %s29 = ssub.s32 %s16, %s28
      %p30 = scmp.eq.s32.totalorder %s29, 0
      %s32 = sadd.s32 %s31, 1
      %s33 = scalar_select %p30, %s31, %s32
      %p36 = pneg %p30
      %p37 = scmp.eq.s32.totalorder %s9, 7
      %p38 = por %p36, %p37
      %p39 = scmp.ne.s32.totalorder %s31, %s34
      %p40 = scmp.eq.s32.totalorder %s9, 0
      %p41 = por %p39, %p40
      %p42 = scmp.ne.s32.totalorder %s31, %s34
      %p43 = scmp.eq.s32.totalorder %s14, 7
      %p44 = por %p42, %p43
      %p45 = scmp.ne.s32.totalorder %s34, %s35
      %p46 = scmp.eq.s32.totalorder %s14, 0
      %p47 = por %p45, %p46
      %p48 = scmp.ne.s32.totalorder %s34, %s35
      %p49 = scmp.eq.s32.totalorder %s15, 7
      %p50 = por %p48, %p49
      %p52 = scmp.ne.s32.totalorder %s35, %s51
      %p53 = scmp.eq.s32.totalorder %s15, 0
      %p54 = por %p52, %p53
      %s55 = ssub.s32 %s16, %s28
      %s56 = ssub.s32 %s17, %s24
      %s57 = sor.u32 %s55, %s56
      %p58 = scmp.eq.s32.totalorder %s57, 0
      %s60 = sadd.s32 %s59, 1
      %s61 = scalar_select %p58, %s59, %s60
      %p64 = pneg %p58
      %p65 = scmp.eq.s32.totalorder %s9, 7
      %p66 = por %p64, %p65
      %p67 = scmp.ne.s32.totalorder %s59, %s62
      %p68 = scmp.eq.s32.totalorder %s9, 0
      %p69 = por %p67, %p68
      %p70 = scmp.ne.s32.totalorder %s59, %s62
      %p71 = scmp.eq.s32.totalorder %s14, 7
      %p72 = por %p70, %p71
      %p73 = scmp.ne.s32.totalorder %s62, %s63
      %p74 = scmp.eq.s32.totalorder %s14, 0
      %p75 = por %p73, %p74
      %p76 = scmp.ne.s32.totalorder %s62, %s63
      %p77 = scmp.eq.s32.totalorder %s15, 7
      %p78 = por %p76, %p77
      %p80 = scmp.ne.s32.totalorder %s63, %s79
      %p81 = scmp.eq.s32.totalorder %s15, 0
      %p82 = por %p80, %p81
      %s83 = ssub.s32 %s16, %s28
      %s84 = ssub.s32 %s17, %s24
      %s85 = sor.u32 %s83, %s84
      %p86 = scmp.eq.s32.totalorder %s85, 0
      %s88 = sadd.s32 %s87, 1
      %s89 = scalar_select %p86, %s87, %s88
      %p92 = pneg %p86
      %p93 = scmp.eq.s32.totalorder %s9, 7
      %p94 = por %p92, %p93
      %p95 = scmp.ne.s32.totalorder %s87, %s90
      %p96 = scmp.eq.s32.totalorder %s9, 0
      %p97 = por %p95, %p96
      %p98 = scmp.ne.s32.totalorder %s87, %s90
      %p99 = scmp.eq.s32.totalorder %s14, 7
      %p100 = por %p98, %p99
      %p101 = scmp.ne.s32.totalorder %s90, %s91
      %p102 = scmp.eq.s32.totalorder %s14, 0
      %p103 = por %p101, %p102
      %p104 = scmp.ne.s32.totalorder %s90, %s91
      %p105 = scmp.eq.s32.totalorder %s15, 7
      %p106 = por %p104, %p105
      %p108 = scmp.ne.s32.totalorder %s91, %s107
      %p109 = scmp.eq.s32.totalorder %s15, 0
      %p110 = por %p108, %p109
      %s111 = ssub.s32 %s16, %s28
      %p112 = scmp.eq.s32.totalorder %s111, 0
      %s114 = sadd.s32 %s113, 1
      %s115 = scalar_select %p112, %s113, %s114
      %p118 = pneg %p112
      %p119 = scmp.eq.s32.totalorder %s9, 7
      %p120 = por %p118, %p119
      %p121 = scmp.ne.s32.totalorder %s113, %s116
      %p122 = scmp.eq.s32.totalorder %s9, 0
      %p123 = por %p121, %p122
      %p124 = scmp.ne.s32.totalorder %s113, %s116
      %p125 = scmp.eq.s32.totalorder %s14, 7
      %p126 = por %p124, %p125
      %p127 = scmp.ne.s32.totalorder %s116, %s117
      %p128 = scmp.eq.s32.totalorder %s14, 0
      %p129 = por %p127, %p128
      %p130 = scmp.ne.s32.totalorder %s116, %s117
      %p131 = scmp.eq.s32.totalorder %s15, 7
      %p132 = por %p130, %p131
      %p134 = scmp.ne.s32.totalorder %s117, %s133
      %p135 = scmp.eq.s32.totalorder %s15, 0
      %p136 = por %p134, %p135
      %p137 = scmp.le.s32.totalorder 1, %s9
      %p138 = scmp.lt.s32.totalorder %s9, 9
      %p139 = pnand %p137, %p138
      %p140 = pneg %p139
      // Predicated region
      $region9: #{cycle2_loss_forward.2} parent=5 // pred_check
        _
      $region10: #{cycle2_loss_forward.2} parent=5 // pred_check_branch
        %142 = sbr.rel (%p139) target = $region12
      $region11: #{cycle2_loss_forward.2} parent=5 // pred_region
        %s143 = ssub.s32 %s9, 1
      $region12: #{cycle2_loss_forward.2} parent=5 // pred_fallthru
        _
      %p144 = scmp.lt.s32.totalorder %s9, 8
      // Predicated region
      $region13: #{cycle2_loss_forward.2} parent=5 // pred_check
        %p145 = pneg %p144
      $region14: #{cycle2_loss_forward.2} parent=5 // pred_check_branch
        %147 = sbr.rel (%p145) target = $region16
      $region15: #{cycle2_loss_forward.2} parent=5 // pred_region
        // Predicated region
        $region17: #{cycle2_loss_forward.2} parent=15 // pred_check
          %p148 = pneg %p41
        $region18: #{cycle2_loss_forward.2} parent=15 // pred_check_branch
          %150 = sbr.rel (%p148) target = $region20
        $region19: #{cycle2_loss_forward.2} parent=15 // pred_region
          %p151 = scmp.lt.s32.totalorder %s16, 1
          %s152 = scalar_select %p151, %s16, 1
          %s153 = smul.addr %s152, 4
          %s154 = scalar_lea.vmem %s0, %s153
        $region20: #{cycle2_loss_forward.2} parent=15 // pred_fallthru
          _
        // Predicated region
        $region21: #{cycle2_loss_forward.2} parent=15 // pred_check
          %p155 = pneg %p69
        $region22: #{cycle2_loss_forward.2} parent=15 // pred_check_branch
          %157 = sbr.rel (%p155) target = $region24
        $region23: #{cycle2_loss_forward.2} parent=15 // pred_region
          %p158 = scmp.lt.s32.totalorder %s16, 1
          %s159 = scalar_select %p158, %s16, 1
          %p160 = scmp.lt.s32.totalorder %s17, 3
          %s161 = scalar_select %p160, %s17, 3
          %s162 = smul.addr %s159, 4
          %s163 = sadd.s32 %s161, %s162
          %s164 = smul.addr %s163, 8
          %s165 = scalar_lea.vmem %s1, %s164
        $region24: #{cycle2_loss_forward.2} parent=15 // pred_fallthru
          _
        // Predicated region
        $region25: #{cycle2_loss_forward.2} parent=15 // pred_check
          %p166 = pneg %p97
        $region26: #{cycle2_loss_forward.2} parent=15 // pred_check_branch
          %168 = sbr.rel (%p166) target = $region28
        $region27: #{cycle2_loss_forward.2} parent=15 // pred_region
          %s169 = sand.u32 %s87, 1
          %s170 = sand.u32 %s87, 1
          %s171 = smul.addr %s170, 32
          %s172 = scalar_lea.vmem [#allocation2], %s171
          %s173 = smul.addr %s16, 16
          %s174 = sadd.s32 %s17, %s173
          %s175 = smul.addr %s174, 8
          %s176 = scalar_lea.vmem %s2, %s175
          // Predicated region
          $region29: #{cycle2_loss_forward.2} parent=27 // pred_check
            _
          $region30: #{cycle2_loss_forward.2} parent=27 // pred_check_branch
            %178 = sbr.rel (0) target = $region32
          $region31: #{cycle2_loss_forward.2} parent=27 // pred_region
            // Predicated region
            $region33: #{cycle2_loss_forward.2} parent=31 // pred_check
              _
            $region34: #{cycle2_loss_forward.2} parent=31 // pred_check_branch
              %180 = sbr.rel (0) target = $region36
            $region35: #{cycle2_loss_forward.2} parent=31 // pred_region
              // Predicated region
              $region48: #{cycle2_loss_forward.2} parent=35 // pred_check
                _
              $region49: #{cycle2_loss_forward.2} parent=35 // pred_check_branch
                %202 = sbr.rel (0) target = $region51
              $region50: #{cycle2_loss_forward.2} parent=35 // pred_region
                loop: start=0, step=1, limit=1
                $region52: #{cycle2_loss_forward.2} parent=50 // loop_pre_header
                  _
                $region53: #{cycle2_loss_forward.2} parent=50 // loop_header
                  %s204 = sphi 0, %s208
                  %p205 = scmp.ge.s32.totalorder %s204, 1
                  %s209 = sphi %s176, %s176
                  %s210 = sphi %s172, %s172
                $region54: #{cycle2_loss_forward.2} parent=50 // loop_header_branch
                  %207 = sbr.rel (%p205) target = $region58
                $region55: #{cycle2_loss_forward.2} parent=50 // loop_body
                  %v211 = vld [vmem:[%s209] sm:$0xff]
                  %212 = vst [vmem:[%s210] sm:$0xff] %v211
                  %v213 = vld [vmem:[%s209 + $0x20] sm:$0xff]
                  %214 = vst [vmem:[%s210 + $0x8] sm:$0xff] %v213
                  %v215 = vld [vmem:[%s209 + $0x40] sm:$0xff]
                  %216 = vst [vmem:[%s210 + $0x10] sm:$0xff] %v215
                  %v217 = vld [vmem:[%s209 + $0x60] sm:$0xff]
                  %218 = vst [vmem:[%s210 + $0x18] sm:$0xff] %v217
                $region56: #{cycle2_loss_forward.2} parent=50 // loop_footer
                  %s208 = sadd.s32 1, %s204
                $region57: #{cycle2_loss_forward.2} parent=50 // loop_footer_branch
                  %203 = sbr.rel target = $region53
                $region58: #{cycle2_loss_forward.2} parent=50 // loop_exit
                  _
              $region51: #{cycle2_loss_forward.2} parent=35 // pred_fallthru
                _
              // Predicated region
              $region59: #{cycle2_loss_forward.2} parent=35 // pred_check
                _
              $region60: #{cycle2_loss_forward.2} parent=35 // pred_check_branch
                %220 = sbr.rel target = $region62
              $region61: #{cycle2_loss_forward.2} parent=35 // pred_region
                _
              $region62: #{cycle2_loss_forward.2} parent=35 // pred_fallthru
                _
            $region36: #{cycle2_loss_forward.2} parent=31 // pred_fallthru
              _
            // Predicated region
            $region37: #{cycle2_loss_forward.2} parent=31 // pred_check
              _
            $region38: #{cycle2_loss_forward.2} parent=31 // pred_check_branch
              %182 = sbr.rel target = $region40
            $region39: #{cycle2_loss_forward.2} parent=31 // pred_region
              %s184 = ssub.s32 256, 1
              loop: start=0, step=1, limit=1
              $region41: #{cycle2_loss_forward.2} parent=39 // loop_pre_header
                _
              $region42: #{cycle2_loss_forward.2} parent=39 // loop_header
                %s186 = sphi 0, %s190
                %p187 = scmp.ge.s32.totalorder %s186, 1
                %s191 = sphi %s176, %s176
                %s192 = sphi %s172, %s172
              $region43: #{cycle2_loss_forward.2} parent=39 // loop_header_branch
                %189 = sbr.rel (%p187) target = $region47
              $region44: #{cycle2_loss_forward.2} parent=39 // loop_body
                %v193 = vld [vmem:[%s191] sm:%s184]
                %194 = vst [vmem:[%s192] sm:%s184] %v193
                %v195 = vld [vmem:[%s191 + $0x20] sm:%s184]
                %196 = vst [vmem:[%s192 + $0x8] sm:%s184] %v195
                %v197 = vld [vmem:[%s191 + $0x40] sm:%s184]
                %198 = vst [vmem:[%s192 + $0x10] sm:%s184] %v197
                %v199 = vld [vmem:[%s191 + $0x60] sm:%s184]
                %200 = vst [vmem:[%s192 + $0x18] sm:%s184] %v199
              $region45: #{cycle2_loss_forward.2} parent=39 // loop_footer
                %s190 = sadd.s32 1, %s186
              $region46: #{cycle2_loss_forward.2} parent=39 // loop_footer_branch
                %185 = sbr.rel target = $region42
              $region47: #{cycle2_loss_forward.2} parent=39 // loop_exit
                _
            $region40: #{cycle2_loss_forward.2} parent=31 // pred_fallthru
              _
          $region32: #{cycle2_loss_forward.2} parent=27 // pred_fallthru
            _
          %221 = vnop
        $region28: #{cycle2_loss_forward.2} parent=15 // pred_fallthru
          _
      $region16: #{cycle2_loss_forward.2} parent=5 // pred_fallthru
        _
      %p222 = scmp.le.s32.totalorder 1, %s9
      %p223 = scmp.lt.s32.totalorder %s9, 9
      %p224 = pnand %p222, %p223
      %p225 = pneg %p224
      // Predicated region
      $region63: #{cycle2_loss_forward.2} parent=5 // pred_check
        _
      $region64: #{cycle2_loss_forward.2} parent=5 // pred_check_branch
        %227 = sbr.rel (%p224) target = $region66
      $region65: #{cycle2_loss_forward.2} parent=5 // pred_region
        %s228 = ssub.s32 %s9, 1
        %s229 = sand.u32 %s90, 1
        %s230 = sand.u32 %s90, 1
        %s231 = smul.addr %s230, 32
        %s232 = scalar_lea.vmem [#allocation2], %s231
        // Predicated region
        $region67: #{cycle2_loss_forward.2} parent=65 // pred_check
          %p233 = pneg %p103
        $region68: #{cycle2_loss_forward.2} parent=65 // pred_check_branch
          %235 = sbr.rel (%p233) target = $region70
        $region69: #{cycle2_loss_forward.2} parent=65 // pred_region
          _
        $region70: #{cycle2_loss_forward.2} parent=65 // pred_fallthru
          _
        %p236 = scmp.lt.s32.totalorder %s18, 1
        %s237 = scalar_select %p236, %s18, 1
        %s238 = smul.addr %s237, 4
        %s239 = scalar_lea.vmem %s0, %s238
        %p240 = pneg %p47
        %p241 = pneg %p44
        %p242 = scmp.lt.s32.totalorder %s18, 1
        %s243 = scalar_select %p242, %s18, 1
        %p244 = scmp.lt.s32.totalorder %s19, 3
        %s245 = scalar_select %p244, %s19, 3
        %s246 = smul.addr %s243, 4
        %s247 = sadd.s32 %s245, %s246
        %s248 = smul.addr %s247, 8
        %s249 = scalar_lea.vmem %s1, %s248
        %p250 = pneg %p75
        %p251 = pneg %p72
        %s252 = sand.u32 %s90, 1
        %s253 = sand.u32 %s90, 1
        %s254 = smul.addr %s253, 32
        %s255 = scalar_lea.vmem [#allocation2], %s254
        %p256 = pneg %p103
        %p257 = pneg %p100
        %p258 = pneg %p129
        %p259 = pneg %p126
        %p260 = scmp.lt.s32.totalorder %s18, 1
        %s261 = scalar_select %p260, %s18, 1
        %s262 = scalar_lea.vmem %s3, %s261
        %p263 = scmp.lt.s32.totalorder %s18, 1
        %s264 = scalar_select %p263, %s18, 1
        %s265 = smul.addr %s264, 4
        %s266 = scalar_lea.vmem %s0, %s265
        %p267 = scmp.lt.s32.totalorder %s18, 1
        %s268 = scalar_select %p267, %s18, 1
        %p269 = scmp.lt.s32.totalorder %s19, 3
        %s270 = scalar_select %p269, %s19, 3
        %s271 = smul.addr %s268, 4
        %s272 = sadd.s32 %s270, %s271
        %s273 = smul.addr %s272, 8
        %s274 = scalar_lea.vmem %s1, %s273
        %p275 = scmp.lt.s32.totalorder %s18, 1
        %s276 = scalar_select %p275, %s18, 1
        %s277 = scalar_lea.vmem %s3, %s276
        %p278 = scmp.eq.s32.totalorder %s19, 0
        // Predicated region
        $region71: #{cycle2_loss_forward.2} parent=65 // pred_check
          %p279 = pneg %p278
        $region72: #{cycle2_loss_forward.2} parent=65 // pred_check_branch
          %281 = sbr.rel (%p279) target = $region74
        $region73: #{cycle2_loss_forward.2} parent=65 // pred_region
          %vm282 = vcmask 0
          %283 = vst.msk [vmem:[%s277] sm:$0x1] %vm282, 0.0
        $region74: #{cycle2_loss_forward.2} parent=65 // pred_fallthru
          _
        %v284 = vld [vmem:[%s232] sm:$0xff]
        %v285 = vld [vmem:[%s232 + $0x8] sm:$0xff]
        %v286 = vld [vmem:[%s232 + $0x10] sm:$0xff]
        %v287 = vld [vmem:[%s232 + $0x18] sm:$0xff]
        %v288 = vld [vmem:[%s274] sm:$0xff]
        %v289 = vsub.f32 %v284, %v288
        %v290 = vsub.f32 %v285, %v288
        %v291 = vsub.f32 %v286, %v288
        %v292 = vsub.f32 %v287, %v288
        %v293 = vand.u32 2147483647, %v289
        %v294 = vand.u32 2147483647, %v290
        %v295 = vand.u32 2147483647, %v291
        %v296 = vand.u32 2147483647, %v292
        %297 = vadd.xlane.f32.xlu0 %v293
        %v298 = vpop.xlane.xlu0 %297
        %299 = vadd.xlane.f32.xlu0 %v294
        %v300 = vpop.xlane.xlu0 %299
        %301 = vadd.xlane.f32.xlu0 %v295
        %v302 = vpop.xlane.xlu0 %301
        %303 = vadd.xlane.f32.xlu0 %v296
        %v304 = vpop.xlane.xlu0 %303
        %v309 = vlaneseq
        %v310 = vand.u32 %v309, 127
        %v311 = vperm.slane %v298, %v310
        %v312 = vperm.slane %v300, %v310
        %v313 = vperm.slane %v302, %v310
        %v314 = vperm.slane %v304, %v310
        %vm315 = vcmask 1041409
        %v316 = vsel %vm315, %v312, %v311
        %vm317 = vcmask 1042434
        %v318 = vsel %vm317, %v313, %v316
        %vm319 = vcmask 1043459
        %v320 = vsel %vm319, %v314, %v318
        %vm322 = vcmask 60416
        %v323 = vsel %vm322, %v320, 0.0
        %324 = vadd.xlane.f32.xlu0 %v323
        %v325 = vpop.xlane.xlu0 %324
        %v326 = vld [vmem:[%s277] sm:$0x1]
        %v327 = vld [vmem:[%s266] sm:$0xf]
        %v328 = vmul.f32 %v325, %v327
        %vm329 = vcmask 3072
        %v330 = vsel %vm329, %v328, 0.0
        %331 = vadd.xlane.f32.xlu0 %v330
        %v332 = vpop.xlane.xlu0 %331
        %v333 = vrot.slane %v332, 4
        %v334 = vadd.f32 %v332, %v333
        %v335 = vrot.slane %v334, 2
        %v336 = vadd.f32 %v334, %v335
        %v337 = vrot.slane %v336, 1
        %v338 = vadd.f32 %v336, %v337
        %s339 = vtos %v338
        %v340 = vstv %s339
        %v341 = vadd.f32 %v326, %v340
        %vm342 = vcmask 0
        %343 = vst.msk [vmem:[%s277] sm:$0x1] %vm342, %v341
        %p344 = scmp.lt.s32.totalorder %s18, 1
        %s345 = scalar_select %p344, %s18, 1
        %s346 = scalar_lea.vmem %s3, %s345
        // Predicated region
        $region75: #{cycle2_loss_forward.2} parent=65 // pred_check
          %p347 = pneg %p126
        $region76: #{cycle2_loss_forward.2} parent=65 // pred_check_branch
          %349 = sbr.rel (%p347) target = $region78
        $region77: #{cycle2_loss_forward.2} parent=65 // pred_region
          _
        $region78: #{cycle2_loss_forward.2} parent=65 // pred_fallthru
          _
      $region66: #{cycle2_loss_forward.2} parent=5 // pred_fallthru
        _
      %p350 = scmp.le.s32.totalorder 2, %s9
      // Predicated region
      $region79: #{cycle2_loss_forward.2} parent=5 // pred_check
        %p351 = pneg %p350
      $region80: #{cycle2_loss_forward.2} parent=5 // pred_check_branch
        %353 = sbr.rel (%p351) target = $region82
      $region81: #{cycle2_loss_forward.2} parent=5 // pred_region
        %s354 = ssub.s32 %s9, 2
        // Predicated region
        $region83: #{cycle2_loss_forward.2} parent=81 // pred_check
          %p355 = pneg %p132
        $region84: #{cycle2_loss_forward.2} parent=81 // pred_check_branch
          %357 = sbr.rel (%p355) target = $region86
        $region85: #{cycle2_loss_forward.2} parent=81 // pred_region
          %p358 = scmp.lt.s32.totalorder %s20, 1
          %s359 = scalar_select %p358, %s20, 1
          %s360 = scalar_lea.vmem %s3, %s359
        $region86: #{cycle2_loss_forward.2} parent=81 // pred_fallthru
          _
      $region82: #{cycle2_loss_forward.2} parent=5 // pred_fallthru
        _
    $region6: #{cycle2_loss_forward.2} parent=1 // loop_footer
      %s13 = sadd.s32 1, %s9
    $region7: #{cycle2_loss_forward.2} parent=1 // loop_footer_branch
      %8 = sbr.rel target = $region3
    $region8: #{cycle2_loss_forward.2} parent=1 // loop_exit
      _

// kernel: cycle2_loss_forward.3
$region0: #{cycle2_loss_forward.3}
  #allocation0 [shape = 'u32[]', space=smem, size = 0x4, offset = 0x4, fixed_abs, tag = 'smem constant byte address 0x4 - core index']
  #allocation1 [shape = 'u32[72,128]{1,0:T(1,128)}', space=vmem, size = 0x9000, scoped, tag = 'internal scratch']
  %s0 = inlined_call_operand.vmem [shape: f32[6,6], index: 0, kind: input, shape index: {}]
  %s1 = inlined_call_operand.vmem [shape: f32[6,18], index: 1, kind: input, shape index: {}]
  %s2 = inlined_call_operand.vmem [shape: f32[6,18], index: 2, kind: input, shape index: {}]
  %s3 = inlined_call_operand.vmem [shape: f32[2,36], index: 3, kind: input, shape index: {}]
  %s4 = inlined_call_operand.vmem [shape: f32[4,36], index: 4, kind: input, shape index: {}]
  %s5 = inlined_call_operand.vmem [shape: f32[4,18], index: 5, kind: input, shape index: {}]
  %s6 = inlined_call_operand.vmem [shape: f32[1,18], index: 6, kind: input, shape index: {}]
  %s7 = inlined_call_operand.vmem [shape: f32[4,24], index: 7, kind: input, shape index: {}]
  %s8 = inlined_call_operand.vmem [shape: f32[2,4,16], index: 8, kind: input, shape index: {}]
  %s9 = inlined_call_operand.vmem [shape: f32[2,1,16], index: 9, kind: input, shape index: {}, may-alias: {9,10}]
  %s10 = inlined_call_operand.vmem [shape: f32[2,1,16], index: 10, kind: input, shape index: {}, may-alias: {9,10}]
  %s11 = inlined_call_operand.vmem [shape: f32[2,4,3], index: 11, kind: input, shape index: {}]
  %s12 = inlined_call_operand.vmem [shape: f32[2,1,3], index: 12, kind: input, shape index: {}]
  %s13 = inlined_call_operand.vmem [shape: f32[2,32], index: 13, kind: input, shape index: {}]
  %s14 = inlined_call_operand.vmem [shape: f32[1,32], index: 14, kind: input, shape index: {}]
  %s15 = inlined_call_operand.vmem [shape: f32[1,16], index: 15, kind: input, shape index: {}]
  %s16 = inlined_call_operand.vmem [shape: f32[1,128], index: 16, kind: output, shape index: {}]
  %s17 = sld [smem:[#allocation0]]
  $region74: #{cycle2_loss_forward.3} parent=0
    _
  %s19 = ssub.s32 1, %s17
  %s20 = scalar_select 0, %s19, %s17
  // Predicated region
  $region2: #{cycle2_loss_forward.3} parent=0 // pred_check
    _
  $region3: #{cycle2_loss_forward.3} parent=0 // pred_check_branch
    %22 = sbr.rel (0) target = $region5
  $region4: #{cycle2_loss_forward.3} parent=0 // pred_region
    _
  $region5: #{cycle2_loss_forward.3} parent=0 // pred_fallthru
    _
  // Predicated region
  $region6: #{cycle2_loss_forward.3} parent=0 // pred_check
    _
  $region7: #{cycle2_loss_forward.3} parent=0 // pred_check_branch
    %24 = sbr.rel (0) target = $region9
  $region8: #{cycle2_loss_forward.3} parent=0 // pred_region
    _
  $region9: #{cycle2_loss_forward.3} parent=0 // pred_fallthru
    _
  // Predicated region
  $region10: #{cycle2_loss_forward.3} parent=0 // pred_check
    _
  $region11: #{cycle2_loss_forward.3} parent=0 // pred_check_branch
    %26 = sbr.rel (0) target = $region13
  $region12: #{cycle2_loss_forward.3} parent=0 // pred_region
    _
  $region13: #{cycle2_loss_forward.3} parent=0 // pred_fallthru
    _
  // Predicated region
  $region14: #{cycle2_loss_forward.3} parent=0 // pred_check
    _
  $region15: #{cycle2_loss_forward.3} parent=0 // pred_check_branch
    %28 = sbr.rel (0) target = $region17
  $region16: #{cycle2_loss_forward.3} parent=0 // pred_region
    _
  $region17: #{cycle2_loss_forward.3} parent=0 // pred_fallthru
    _
  // Predicated region
  $region18: #{cycle2_loss_forward.3} parent=0 // pred_check
    _
  $region19: #{cycle2_loss_forward.3} parent=0 // pred_check_branch
    %30 = sbr.rel (0) target = $region21
  $region20: #{cycle2_loss_forward.3} parent=0 // pred_region
    _
  $region21: #{cycle2_loss_forward.3} parent=0 // pred_fallthru
    _
  // Predicated region
  $region22: #{cycle2_loss_forward.3} parent=0 // pred_check
    _
  $region23: #{cycle2_loss_forward.3} parent=0 // pred_check_branch
    %32 = sbr.rel (0) target = $region25
  $region24: #{cycle2_loss_forward.3} parent=0 // pred_region
    _
  $region25: #{cycle2_loss_forward.3} parent=0 // pred_fallthru
    _
  // Predicated region
  $region26: #{cycle2_loss_forward.3} parent=0 // pred_check
    _
  $region27: #{cycle2_loss_forward.3} parent=0 // pred_check_branch
    %34 = sbr.rel (0) target = $region29
  $region28: #{cycle2_loss_forward.3} parent=0 // pred_region
    _
  $region29: #{cycle2_loss_forward.3} parent=0 // pred_fallthru
    _
  // Predicated region
  $region30: #{cycle2_loss_forward.3} parent=0 // pred_check
    _
  $region31: #{cycle2_loss_forward.3} parent=0 // pred_check_branch
    %36 = sbr.rel (0) target = $region33
  $region32: #{cycle2_loss_forward.3} parent=0 // pred_region
    _
  $region33: #{cycle2_loss_forward.3} parent=0 // pred_fallthru
    _
  // Predicated region
  $region34: #{cycle2_loss_forward.3} parent=0 // pred_check
    _
  $region35: #{cycle2_loss_forward.3} parent=0 // pred_check_branch
    %38 = sbr.rel (0) target = $region37
  $region36: #{cycle2_loss_forward.3} parent=0 // pred_region
    _
  $region37: #{cycle2_loss_forward.3} parent=0 // pred_fallthru
    _
  // Predicated region
  $region38: #{cycle2_loss_forward.3} parent=0 // pred_check
    _
  $region39: #{cycle2_loss_forward.3} parent=0 // pred_check_branch
    %40 = sbr.rel (0) target = $region41
  $region40: #{cycle2_loss_forward.3} parent=0 // pred_region
    _
  $region41: #{cycle2_loss_forward.3} parent=0 // pred_fallthru
    _
  // Predicated region
  $region42: #{cycle2_loss_forward.3} parent=0 // pred_check
    _
  $region43: #{cycle2_loss_forward.3} parent=0 // pred_check_branch
    %42 = sbr.rel (0) target = $region45
  $region44: #{cycle2_loss_forward.3} parent=0 // pred_region
    _
  $region45: #{cycle2_loss_forward.3} parent=0 // pred_fallthru
    _
  // Predicated region
  $region46: #{cycle2_loss_forward.3} parent=0 // pred_check
    _
  $region47: #{cycle2_loss_forward.3} parent=0 // pred_check_branch
    %44 = sbr.rel (0) target = $region49
  $region48: #{cycle2_loss_forward.3} parent=0 // pred_region
    _
  $region49: #{cycle2_loss_forward.3} parent=0 // pred_fallthru
    _
  // Predicated region
  $region50: #{cycle2_loss_forward.3} parent=0 // pred_check
    _
  $region51: #{cycle2_loss_forward.3} parent=0 // pred_check_branch
    %46 = sbr.rel (0) target = $region53
  $region52: #{cycle2_loss_forward.3} parent=0 // pred_region
    _
  $region53: #{cycle2_loss_forward.3} parent=0 // pred_fallthru
    _
  // Predicated region
  $region54: #{cycle2_loss_forward.3} parent=0 // pred_check
    _
  $region55: #{cycle2_loss_forward.3} parent=0 // pred_check_branch
    %48 = sbr.rel (0) target = $region57
  $region56: #{cycle2_loss_forward.3} parent=0 // pred_region
    _
  $region57: #{cycle2_loss_forward.3} parent=0 // pred_fallthru
    _
  // Predicated region
  $region58: #{cycle2_loss_forward.3} parent=0 // pred_check
    _
  $region59: #{cycle2_loss_forward.3} parent=0 // pred_check_branch
    %50 = sbr.rel (0) target = $region61
  $region60: #{cycle2_loss_forward.3} parent=0 // pred_region
    _
  $region61: #{cycle2_loss_forward.3} parent=0 // pred_fallthru
    _
  // Predicated region
  $region62: #{cycle2_loss_forward.3} parent=0 // pred_check
    _
  $region63: #{cycle2_loss_forward.3} parent=0 // pred_check_branch
    %52 = sbr.rel (0) target = $region65
  $region64: #{cycle2_loss_forward.3} parent=0 // pred_region
    _
  $region65: #{cycle2_loss_forward.3} parent=0 // pred_fallthru
    _
  %v53 = vld [vmem:[%s1] sm:$0x3f]
  %v54 = vld [vmem:[%s0] sm:$0x3f]
  %vm55 = vcmask 48128
  %v57 = vsel %vm55, %v54, 0
  %vm59 = vcmask 1045504
  %v61 = vsel %vm59, %v53, 0
  %63 = vmatpush.msra.mxu0 0.0
  %64 = vmatpush.msra.mxu0 0.0
  %65 = vmatpush.msra.mxu0 0.0
  %66 = vmatpush.msra.mxu0 0.0
  %67 = vmatpush.msra.mxu0 0.0
  %68 = vmatpush.msra.mxu0 0.0
  %69 = vmatpush.msra.mxu0 0.0
  %70 = vmatpush.msra.mxu0 0.0
  %71 = vmatpush.msra.mxu0 0.0
  %72 = vmatpush.msra.mxu0 0.0
  %73 = vmatpush.msra.mxu0 0.0
  %74 = vmatpush.msra.mxu0 0.0
  %75 = vmatpush.msra.mxu0 0.0
  %76 = vmatpush.msra.mxu0 0.0
  %77 = vmatpush.msra.mxu0 0.0
  %78 = vmatpush.msra.mxu0 %v61
  %79 = vmatmul.f32.gmra.mxu0 %v57
  %v80 = vpop.f32.mrf.mxu0
  %v81 = vadd.f32 0.0, %v80
  %82 = vdwg.mxu0
  %v83 = vmul.f32 %v81, %v81
  %v84 = vlaneseq
  %v85 = vand.u32 %v84, 127
  %vm86 = vcmp.lt.s32.totalorder %v85, 6
  %v87 = vsel %vm86, 1, 0
  %v88 = vcvt.s32.f32 %v87
  %v89 = vmul.f32 %v83, %v88
  %vm90 = vcmask 144384
  %v91 = vsel %vm90, %v89, 0.0
  %92 = vadd.xlane.f32.xlu0 %v91
  %v93 = vpop.xlane.xlu0 %92
  %v94 = vrot.slane %v93, 4
  %v95 = vadd.f32 %v93, %v94
  %v96 = vrot.slane %v95, 2
  %v97 = vadd.f32 %v95, %v96
  %v98 = vrot.slane %v97, 1
  %v99 = vadd.f32 %v97, %v98
  %s100 = vtos %v99
  %v101 = vsel %vm90, %v83, 0.0
  %102 = vadd.xlane.f32.xlu0 %v101
  %v103 = vpop.xlane.xlu0 %102
  %v104 = vrot.slane %v103, 4
  %v105 = vadd.f32 %v103, %v104
  %v106 = vrot.slane %v105, 2
  %v107 = vadd.f32 %v105, %v106
  %v108 = vrot.slane %v107, 1
  %v109 = vadd.f32 %v107, %v108
  %s110 = vtos %v109
  %s111 = ssub.f32 %s110, %s100
  %v112 = vld [vmem:[%s3] sm:$0x3]
  %v113 = vld [vmem:[%s4] sm:$0xf]
  %v114 = vmul.f32 %v112, %v112
  %vm115 = vcmask 287744
  %v116 = vsel %vm115, %v114, 0.0
  %117 = vadd.xlane.f32.xlu0 %v116
  %v118 = vpop.xlane.xlu0 %117
  %v119 = vrot.slane %v118, 4
  %v120 = vadd.f32 %v118, %v119
  %v121 = vrot.slane %v120, 2
  %v122 = vadd.f32 %v120, %v121
  %v123 = vrot.slane %v122, 1
  %v124 = vadd.f32 %v122, %v123
  %s125 = vtos %v124
  %v126 = vmul.f32 %v113, %v113
  %vm127 = vcmask 289792
  %v128 = vsel %vm127, %v126, 0.0
  %129 = vadd.xlane.f32.xlu0 %v128
  %v130 = vpop.xlane.xlu0 %129
  %v131 = vrot.slane %v130, 4
  %v132 = vadd.f32 %v130, %v131
  %v133 = vrot.slane %v132, 2
  %v134 = vadd.f32 %v132, %v133
  %v135 = vrot.slane %v134, 1
  %v136 = vadd.f32 %v134, %v135
  %s137 = vtos %v136
  %v138 = vld [vmem:[%s5] sm:$0xf]
  %v139 = vld [vmem:[%s7] sm:$0xf]
  %v140 = vmul.f32 %v138, %v138
  %v141 = vld [vmem:[%s6] sm:$0x1]
  %v143 = vperm.slane %v141, 0
  %v145 = vmul.f32 %v140, %v143
  %vm146 = vcmask 142336
  %v147 = vsel %vm146, %v145, 0.0
  %148 = vadd.xlane.f32.xlu0 %v147
  %v149 = vpop.xlane.xlu0 %148
  %v150 = vrot.slane %v149, 4
  %v151 = vadd.f32 %v149, %v150
  %v152 = vrot.slane %v151, 2
  %v153 = vadd.f32 %v151, %v152
  %v154 = vrot.slane %v153, 1
  %v155 = vadd.f32 %v153, %v154
  %s156 = vtos %v155
  %v157 = vmul.f32 %v139, %v139
  %vm158 = vcmask 191488
  %v159 = vsel %vm158, %v157, 0.0
  %160 = vadd.xlane.f32.xlu0 %v159
  %v161 = vpop.xlane.xlu0 %160
  %v162 = vrot.slane %v161, 4
  %v163 = vadd.f32 %v161, %v162
  %v164 = vrot.slane %v163, 2
  %v165 = vadd.f32 %v163, %v164
  %v166 = vrot.slane %v165, 1
  %v167 = vadd.f32 %v165, %v166
  %s168 = vtos %v167
  %s169 = smul.f32 %s168, 0.33333334
  %s170 = ssub.f32 %s156, %s169
  %s171 = smul.f32 %s170, 0.5
  %v172 = vld [vmem:[%s8] sm:$0xf]
  %v173 = vld [vmem:[%s8 + $0x4] sm:$0xf]
  %v174 = vld [vmem:[%s10] sm:$0x1]
  %v175 = vld [vmem:[%s10 + $0x1] sm:$0x1]
  %v178 = vperm.slane %v174, 0
  %v179 = vperm.slane %v175, 0
  %v182 = vsub.f32 %v172, %v178
  %v183 = vsub.f32 %v173, %v179
  %v184 = vmul.f32 %v182, %v182
  %v185 = vmul.f32 %v183, %v183
  %vm186 = vcmask 125952
  %v187 = vsel %vm186, %v184, 0.0
  %v188 = vsel %vm186, %v185, 0.0
  %v189 = vadd.f32 %v187, %v188
  %190 = vadd.xlane.f32.xlu0 %v189
  %v191 = vpop.xlane.xlu0 %190
  %v192 = vrot.slane %v191, 4
  %v193 = vadd.f32 %v191, %v192
  %v194 = vrot.slane %v193, 2
  %v195 = vadd.f32 %v193, %v194
  %v196 = vrot.slane %v195, 1
  %v197 = vadd.f32 %v195, %v196
  %s198 = vtos %v197
  %v199 = vld [vmem:[%s11] sm:$0xf]
  %v200 = vld [vmem:[%s11 + $0x4] sm:$0xf]
  %v201 = vld [vmem:[%s12] sm:$0x1]
  %v202 = vld [vmem:[%s12 + $0x1] sm:$0x1]
  %v205 = vperm.slane %v201, 0
  %v206 = vperm.slane %v202, 0
  %v209 = vsub.f32 %v199, %v205
  %v210 = vsub.f32 %v200, %v206
  %v211 = vmul.f32 %v209, %v209
  %v212 = vmul.f32 %v210, %v210
  %vm213 = vcmask 19456
  %v214 = vsel %vm213, %v211, 0.0
  %v215 = vsel %vm213, %v212, 0.0
  %v216 = vadd.f32 %v214, %v215
  %217 = vadd.xlane.f32.xlu0 %v216
  %v218 = vpop.xlane.xlu0 %217
  %v219 = vrot.slane %v218, 4
  %v220 = vadd.f32 %v218, %v219
  %v221 = vrot.slane %v220, 2
  %v222 = vadd.f32 %v220, %v221
  %v223 = vrot.slane %v222, 1
  %v224 = vadd.f32 %v222, %v223
  %s225 = vtos %v224
  %v226 = vld [vmem:[%s13] sm:$0x3]
  %v227 = vmul.f32 %v226, %v226
  %vm228 = vcmask 254976
  %v229 = vsel %vm228, %v227, 0.0
  %230 = vadd.xlane.f32.xlu0 %v229
  %v231 = vpop.xlane.xlu0 %230
  %v232 = vrot.slane %v231, 4
  %v233 = vadd.f32 %v231, %v232
  %v234 = vrot.slane %v233, 2
  %v235 = vadd.f32 %v233, %v234
  %v236 = vrot.slane %v235, 1
  %v237 = vadd.f32 %v235, %v236
  %s238 = vtos %v237
  %v239 = vld [vmem:[%s14] sm:$0x1]
  %v241 = vperm.slane %v239, 0
  %v243 = vmul.f32 %v226, %v241
  %v244 = vsel %vm228, %v243, 0.0
  %245 = vadd.xlane.f32.xlu0 %v244
  %v246 = vpop.xlane.xlu0 %245
  %v247 = vrot.slane %v246, 4
  %v248 = vadd.f32 %v246, %v247
  %v249 = vrot.slane %v248, 2
  %v250 = vadd.f32 %v248, %v249
  %v251 = vrot.slane %v250, 1
  %v252 = vadd.f32 %v250, %v251
  %s253 = vtos %v252
  %v254 = vld [vmem:[%s2] sm:$0x3f]
  %v255 = vmul.f32 %v53, %v254
  %v256 = vsel %vm90, %v255, 0.0
  %257 = vadd.xlane.f32.xlu0 %v256
  %v258 = vpop.xlane.xlu0 %257
  %v259 = vrot.slane %v258, 4
  %v260 = vadd.f32 %v258, %v259
  %v261 = vrot.slane %v260, 2
  %v262 = vadd.f32 %v260, %v261
  %v263 = vrot.slane %v262, 1
  %v264 = vadd.f32 %v262, %v263
  %s265 = vtos %v264
  %s266 = sadd.f32 %s253, %s265
  %v267 = vld [vmem:[%s9] sm:$0x1]
  %v268 = vld [vmem:[%s9 + $0x1] sm:$0x1]
  %v269 = vld [vmem:[%s15] sm:$0x1]
  %v270 = vmul.f32 %v267, %v269
  %v271 = vmul.f32 %v268, %v269
  %vm272 = vcmask 122880
  %v273 = vsel %vm272, %v270, 0.0
  %v274 = vsel %vm272, %v271, 0.0
  %v275 = vadd.f32 %v273, %v274
  %276 = vadd.xlane.f32.xlu0 %v275
  %v277 = vpop.xlane.xlu0 %276
  %v278 = vrot.slane %v277, 4
  %v279 = vadd.f32 %v277, %v278
  %v280 = vrot.slane %v279, 2
  %v281 = vadd.f32 %v279, %v280
  %v282 = vrot.slane %v281, 1
  %v283 = vadd.f32 %v281, %v282
  %s284 = vtos %v283
  %vm285 = vcmp.eq.s32.totalorder %v85, 0
  %v286 = vstv %s100
  %v287 = vsel %vm285, %v286, 0.0
  %vm288 = vcmp.eq.s32.totalorder %v85, 1
  %v289 = vstv %s111
  %v290 = vsel %vm288, %v289, %v287
  %vm291 = vcmp.eq.s32.totalorder %v85, 2
  %v292 = vstv %s125
  %v293 = vsel %vm291, %v292, %v290
  %vm294 = vcmp.eq.s32.totalorder %v85, 3
  %v295 = vstv %s137
  %v296 = vsel %vm294, %v295, %v293
  %vm297 = vcmp.eq.s32.totalorder %v85, 4
  %v298 = vstv %s171
  %v299 = vsel %vm297, %v298, %v296
  %vm300 = vcmp.eq.s32.totalorder %v85, 5
  %v301 = vstv %s198
  %v302 = vsel %vm300, %v301, %v299
  %vm303 = vcmp.eq.s32.totalorder %v85, 6
  %v304 = vstv %s225
  %v305 = vsel %vm303, %v304, %v302
  %vm306 = vcmp.eq.s32.totalorder %v85, 7
  %v307 = vstv %s238
  %v308 = vsel %vm306, %v307, %v305
  %vm309 = vcmp.eq.s32.totalorder %v85, 8
  %v310 = vstv %s266
  %v311 = vsel %vm309, %v310, %v308
  %vm312 = vcmp.eq.s32.totalorder %v85, 9
  %v313 = vstv %s284
  %v314 = vsel %vm312, %v313, %v311
  %315 = vst [vmem:[%s16] sm:$0x1] %v314
  // Predicated region
  $region66: #{cycle2_loss_forward.3} parent=0 // pred_check
    _
  $region67: #{cycle2_loss_forward.3} parent=0 // pred_check_branch
    %317 = sbr.rel (0) target = $region69
  $region68: #{cycle2_loss_forward.3} parent=0 // pred_region
    _
  $region69: #{cycle2_loss_forward.3} parent=0 // pred_fallthru
    _
  // Predicated region
  $region70: #{cycle2_loss_forward.3} parent=0 // pred_check
    _
  $region71: #{cycle2_loss_forward.3} parent=0 // pred_check_branch
    %319 = sbr.rel (0) target = $region73
  $region72: #{cycle2_loss_forward.3} parent=0 // pred_region
    _
  $region73: #{cycle2_loss_forward.3} parent=0 // pred_fallthru
    _

</llo_original>
